<compile_context>
chip_gen: v5e
topology: v5e:2x2
jax: 0.10.0
libtpu: 0.0.40
codegen_flags: <defaults>
</compile_context>

<pallas_src>
import jax
import jax.numpy as jnp
from jax.experimental import pallas as pl
from jax.experimental.pallas import tpu as pltpu

# Layer sizes (fixed by the PyTorch module).
IN, H1, H2, H3, OUT = 6, 64, 32, 16, 3
XROWS = 8                      # x^T padded to 8 sublanes: rows 0..5 = features, 6 = ones, 7 = zeros

# Packed-parameter slab layout (PyTorch (out, in) weight layout at column 0 of each row block).
SLAB = 128
R1, R2, R3, R4 = 0, H1, H1 + H2, H1 + H2 + H3          # 0, 64, 96, 112
BIAS_COL = 120                                          # > max fan_in (64), < 128

_MAX_BLOCK_BATCH = 16384       # VMEM cap: ~0.55 KiB/row -> ~9 MiB, safe on v5e/v6e/v7x
_SMALL_BATCH = 2048            # single-grid-step fast path threshold


def pack_params(params, dtype=jnp.bfloat16):
    """params: list of (w:(out,in), b:(out,)) in PyTorch layout -> (128,128) packed slab."""
    slab = jnp.zeros((SLAB, SLAB), jnp.float32)
    row = 0
    for idx, (w, b) in enumerate(params):
        o, i = w.shape
        slab = slab.at[row:row + o, :i].set(w.astype(jnp.float32))
        slab = slab.at[row:row + o, BIAS_COL].set(b.astype(jnp.float32))
        if idx == 0:
            # Fold layer-1 bias into the matmul: weight column IN multiplies the ones row of x^T.
            slab = slab.at[row:row + o, i].set(b.astype(jnp.float32))
        row += o
    return slab.astype(dtype)


def mlp_kernel(x_ref, p_ref, o_ref):
    # x_ref: (XROWS, bn) bf16 -- batch on the lane axis; row 6 = ones (bias), row 7 = zeros.
    # p_ref: (128, 128) bf16 packed parameter slab, VMEM-resident across grid steps.
    # o_ref: (OUT, bn) f32 lane-dense output tile.
    x = x_ref[...]

    w1 = p_ref[R1:R1 + H1, :XROWS]                                     # (64, 8), col 6 = b1
    w2 = p_ref[R2:R2 + H2, :H1]
    b2 = p_ref[R2:R2 + H2, BIAS_COL:BIAS_COL + 1].astype(jnp.float32)
    w3 = p_ref[R3:R3 + H3, :H2]
    b3 = p_ref[R3:R3 + H3, BIAS_COL:BIAS_COL + 1].astype(jnp.float32)
    w4 = p_ref[R4:R4 + OUT, :H3]
    b4 = p_ref[R4:R4 + OUT, BIAS_COL:BIAS_COL + 1].astype(jnp.float32)

    # y^T = W @ x^T + b (identical math to nn.Linear), bf16 MXU inputs, f32 accumulation.
    h = jnp.maximum(jnp.dot(w1, x, preferred_element_type=jnp.float32), 0.0)          # bias folded
    h = jnp.maximum(jnp.dot(w2, h.astype(jnp.bfloat16), preferred_element_type=jnp.float32) + b2, 0.0)
    h = jnp.maximum(jnp.dot(w3, h.astype(jnp.bfloat16), preferred_element_type=jnp.float32) + b3, 0.0)
    out = jnp.dot(w4, h.astype(jnp.bfloat16), preferred_element_type=jnp.float32) + b4
    o_ref[...] = out.astype(o_ref.dtype)


def _pick_batch_tile(batch, block_batch):
    padded128 = pl.cdiv(batch, 128) * 128
    if padded128 <= _SMALL_BATCH:
        return padded128                                  # grid = (1,): no pipeline overhead
    bn = min(block_batch, _MAX_BLOCK_BATCH)
    bn = max(128, (bn // 128) * 128)
    # Keep >= 2 grid steps so ("parallel",) can shard across v7x's two TensorCores.
    half = pl.cdiv(padded128 // 2, 128) * 128
    return max(128, min(bn, half))


def mlp_forward(x, slab, *, block_batch=8192):
    """x: (batch, IN) float; slab: packed params from pack_params(). Returns (batch, OUT) f32."""
    batch = x.shape[0]
    bn = _pick_batch_tile(batch, block_batch)
    padded = pl.cdiv(batch, bn) * bn
    grid = padded // bn

    # Single fused layout/cast pass over x (transpose + ones row + pad + bf16 cast); marked
    # fusible into the pallas_call operand via allow_input_fusion below.
    x_t = x.astype(jnp.bfloat16).T                                    # (IN, batch)
    ones = jnp.ones((1, batch), jnp.bfloat16)
    zeros = jnp.zeros((XROWS - IN - 1, batch), jnp.bfloat16)
    x_aug = jnp.concatenate([x_t, ones, zeros], axis=0)               # (8, batch)
    x_aug = jnp.pad(x_aug, ((0, 0), (0, padded - batch)))             # (8, padded)

    flops = 2 * padded * (XROWS * H1 + H1 * H2 + H2 * H3 + H3 * OUT)
    bytes_accessed = 2 * XROWS * padded + 4 * OUT * padded + 2 * SLAB * SLAB

    out_t = pl.pallas_call(
        mlp_kernel,
        out_shape=jax.ShapeDtypeStruct((OUT, padded), jnp.float32),
        grid_spec=pltpu.PrefetchScalarGridSpec(
            num_scalar_prefetch=0,
            grid=(grid,),
            in_specs=[
                pl.BlockSpec((XROWS, bn), lambda i: (0, i)),      # streamed batch tile
                pl.BlockSpec((SLAB, SLAB), lambda i: (0, 0)),     # params: VMEM-resident
            ],
            out_specs=pl.BlockSpec((OUT, bn), lambda i: (0, i)),
        ),
        compiler_params=pltpu.CompilerParams(
            dimension_semantics=("parallel",),
            allow_input_fusion=[True, False],
            vmem_limit_bytes=32 * 1024 * 1024,
        ),
        cost_estimate=pl.CostEstimate(
            flops=flops, transcendentals=0, bytes_accessed=bytes_accessed
        ),
    )(x_aug, slab)

    return out_t[:, :batch].T  # (batch, OUT)


def reference_forward_f32(x, params):
    """Pure f32 reference (PyTorch semantics)."""
    h = x
    for idx, (w, b) in enumerate(params):
        h = jnp.dot(h, w.T, precision=jax.lax.Precision.HIGHEST) + b
        if idx < len(params) - 1:
            h = jnp.maximum(h, 0.0)
    return h


def reference_forward_bf16(x, params):
    """Reference matching the kernel's numerics: bf16 storage, f32 accumulation."""
    bf = jnp.bfloat16
    h = x.astype(bf)
    for idx, (w, b) in enumerate(params):
        y = jnp.dot(h, w.astype(bf).T, preferred_element_type=jnp.float32)
        y = y + b.astype(bf).astype(jnp.float32)
        if idx < len(params) - 1:
            h = jnp.maximum(y, 0.0).astype(bf)
        else:
            h = y
    return h


def init_linear(key, fan_in, fan_out):
    # Deterministic init mimicking PyTorch's U(-1/sqrt(fan_in), 1/sqrt(fan_in)),
    # stored in PyTorch layout: W (out, in), b (out,).
    kw, kb = jax.random.split(key)
    bound = 1.0 / (fan_in ** 0.5)
    w = jax.random.uniform(kw, (fan_out, fan_in), jnp.float32, -bound, bound)
    b = jax.random.uniform(kb, (fan_out,), jnp.float32, -bound, bound)
    return w, b


if __name__ == "__main__":
    input_size = 6
    output_size = 3
    batch = 300  # not a multiple of the tile: exercises padding + small-batch fast path

    key = jax.random.PRNGKey(0)
    kx, k1, k2, k3, k4 = jax.random.split(key, 5)

    x = jax.random.normal(kx, (batch, input_size), jnp.float32)

    params = [
        init_linear(k1, input_size, H1),
        init_linear(k2, H1, H2),
        init_linear(k3, H2, H3),
        init_linear(k4, H3, output_size),
    ]
    slab = pack_params(params)

    out = mlp_forward(x, slab)
    out = jax.block_until_ready(out)
    assert out.shape == (batch, output_size)

    # Tight check against a reference with identical bf16-storage / f32-accumulation numerics.
    ref_q = reference_forward_bf16(x, params)
    err_q = float(jnp.max(jnp.abs(out - ref_q)))
    assert jnp.allclose(out, ref_q, atol=1e-3, rtol=1e-3), err_q

    # Loose check against the pure-f32 PyTorch-semantics reference (bf16 storage error bound).
    ref_f = reference_forward_f32(x, params)
    err_f = float(jnp.max(jnp.abs(out - ref_f)))
    assert jnp.allclose(out, ref_f, atol=1e-1, rtol=1e-1), err_f

    print("KERNEL_OK")
</pallas_src>

<mosaic_0001>
module attributes {stable_mosaic.version = 11 : i64} {
  func.func @mlp_kernel(%arg0: i32, %arg1: memref<8x384xbf16, #tpu.memory_space<vmem>>, %arg2: memref<128x128xbf16, #tpu.memory_space<vmem>>, %arg3: memref<3x384xf32, #tpu.memory_space<vmem>>) attributes {dimension_semantics = [#tpu.dimension_semantics<parallel>], iteration_bounds = array<i64: 1>, scalar_prefetch = 0 : i64, scratch_operands = 0 : i64, tpu.core_type = #tpu.core_type<tc>, window_params = [{transform_indices = @transform_0, window_bounds = array<i64: 8, 384>}, {pipeline_mode = #tpu.pipeline_mode<synchronous>, transform_indices = @transform_1, window_bounds = array<i64: 128, 128>}, {transform_indices = @transform_2, window_bounds = array<i64: 3, 384>}]} {
    %c0 = arith.constant 0 : index
    %c0_0 = arith.constant 0 : index
    %0 = vector.load %arg1[%c0, %c0_0] : memref<8x384xbf16, #tpu.memory_space<vmem>>, vector<8x384xbf16>
    %c0_1 = arith.constant 0 : index
    %c0_2 = arith.constant 0 : index
    %1 = vector.load %arg2[%c0_1, %c0_2] : memref<128x128xbf16, #tpu.memory_space<vmem>>, vector<64x8xbf16>
    %c64 = arith.constant 64 : index
    %c0_3 = arith.constant 0 : index
    %2 = vector.load %arg2[%c64, %c0_3] : memref<128x128xbf16, #tpu.memory_space<vmem>>, vector<32x64xbf16>
    %c64_4 = arith.constant 64 : index
    %c120 = arith.constant 120 : index
    %3 = vector.load %arg2[%c64_4, %c120] : memref<128x128xbf16, #tpu.memory_space<vmem>>, vector<32x1xbf16>
    %4 = arith.extf %3 : vector<32x1xbf16> to vector<32x1xf32>
    %c96 = arith.constant 96 : index
    %c0_5 = arith.constant 0 : index
    %5 = vector.load %arg2[%c96, %c0_5] : memref<128x128xbf16, #tpu.memory_space<vmem>>, vector<16x32xbf16>
    %c96_6 = arith.constant 96 : index
    %c120_7 = arith.constant 120 : index
    %6 = vector.load %arg2[%c96_6, %c120_7] : memref<128x128xbf16, #tpu.memory_space<vmem>>, vector<16x1xbf16>
    %7 = arith.extf %6 : vector<16x1xbf16> to vector<16x1xf32>
    %c112 = arith.constant 112 : index
    %c0_8 = arith.constant 0 : index
    %8 = vector.load %arg2[%c112, %c0_8] : memref<128x128xbf16, #tpu.memory_space<vmem>>, vector<3x16xbf16>
    %c112_9 = arith.constant 112 : index
    %c120_10 = arith.constant 120 : index
    %9 = vector.load %arg2[%c112_9, %c120_10] : memref<128x128xbf16, #tpu.memory_space<vmem>>, vector<3x1xbf16>
    %10 = arith.extf %9 : vector<3x1xbf16> to vector<3x1xf32>
    %cst = arith.constant dense<0.000000e+00> : vector<64x384xf32>
    %11 = tpu.matmul %1, %0, %cst {dimension_numbers = #tpu.dot_dimension_numbers<[1], [0], [0], [1], [0, 0, 1, 1], [], []>} : vector<64x8xbf16>, vector<8x384xbf16>, vector<64x384xf32> -> vector<64x384xf32>
    %cst_11 = arith.constant 0.000000e+00 : f32
    %12 = vector.broadcast %cst_11 : f32 to vector<64x384xf32>
    %13 = arith.maximumf %11, %12 : vector<64x384xf32>
    %14 = arith.truncf %13 : vector<64x384xf32> to vector<64x384xbf16>
    %cst_12 = arith.constant dense<0.000000e+00> : vector<32x384xf32>
    %15 = tpu.matmul %2, %14, %cst_12 {dimension_numbers = #tpu.dot_dimension_numbers<[1], [0], [0], [1], [0, 0, 1, 1], [], []>} : vector<32x64xbf16>, vector<64x384xbf16>, vector<32x384xf32> -> vector<32x384xf32>
    %16 = vector.broadcast %4 : vector<32x1xf32> to vector<32x384xf32>
    %17 = arith.addf %15, %16 : vector<32x384xf32>
    %cst_13 = arith.constant 0.000000e+00 : f32
    %18 = vector.broadcast %cst_13 : f32 to vector<32x384xf32>
    %19 = arith.maximumf %17, %18 : vector<32x384xf32>
    %20 = arith.truncf %19 : vector<32x384xf32> to vector<32x384xbf16>
    %cst_14 = arith.constant dense<0.000000e+00> : vector<16x384xf32>
    %21 = tpu.matmul %5, %20, %cst_14 {dimension_numbers = #tpu.dot_dimension_numbers<[1], [0], [0], [1], [0, 0, 1, 1], [], []>} : vector<16x32xbf16>, vector<32x384xbf16>, vector<16x384xf32> -> vector<16x384xf32>
    %22 = vector.broadcast %7 : vector<16x1xf32> to vector<16x384xf32>
    %23 = arith.addf %21, %22 : vector<16x384xf32>
    %cst_15 = arith.constant 0.000000e+00 : f32
    %24 = vector.broadcast %cst_15 : f32 to vector<16x384xf32>
    %25 = arith.maximumf %23, %24 : vector<16x384xf32>
    %26 = arith.truncf %25 : vector<16x384xf32> to vector<16x384xbf16>
    %cst_16 = arith.constant dense<0.000000e+00> : vector<3x384xf32>
    %27 = tpu.matmul %8, %26, %cst_16 {dimension_numbers = #tpu.dot_dimension_numbers<[1], [0], [0], [1], [0, 0, 1, 1], [], []>} : vector<3x16xbf16>, vector<16x384xbf16>, vector<3x384xf32> -> vector<3x384xf32>
    %28 = vector.broadcast %10 : vector<3x1xf32> to vector<3x384xf32>
    %29 = arith.addf %27, %28 : vector<3x384xf32>
    %c0_17 = arith.constant 0 : index
    %c0_18 = arith.constant 0 : index
    %30 = vector.load %arg3[%c0_17, %c0_18] : memref<3x384xf32, #tpu.memory_space<vmem>>, vector<3x384xf32>
    tpu.vector_store %arg3[%c0_17, %c0_18], %29 {strides = array<i32>} : memref<3x384xf32, #tpu.memory_space<vmem>>, vector<3x384xf32>,
    return
  }
  func.func @transform_0(%arg0: i32) -> (i32, i32) {
    %c0_i32 = arith.constant 0 : i32
    %c0_i32_0 = arith.constant 0 : i32
    return %c0_i32, %arg0 : i32, i32
  }
  func.func @transform_1(%arg0: i32) -> (i32, i32) {
    %c0_i32 = arith.constant 0 : i32
    %c0_i32_0 = arith.constant 0 : i32
    %c0_i32_1 = arith.constant 0 : i32
    return %c0_i32, %c0_i32_0 : i32, i32
  }
  func.func @transform_2(%arg0: i32) -> (i32, i32) {
    %c0_i32 = arith.constant 0 : i32
    %c0_i32_0 = arith.constant 0 : i32
    return %c0_i32, %arg0 : i32, i32
  }
}

</mosaic_0001>

<llo_original>
// kernel: tpu_custom_call.1
$region0: #{tpu_custom_call.1}
  #allocation0 [shape = 'u32[]', space=smem, size = 0x4, offset = 0x4, fixed_abs, tag = 'smem constant byte address 0x4 - core index']
  #allocation1 [shape = 'u32[72,128]{1,0:T(1,128)}', space=vmem, size = 0x9000, scoped, tag = 'internal scratch']
  %s0 = inlined_call_operand.hbm [shape: bf16[8,384], index: 0, kind: input, shape index: {}]
  %s1 = inlined_call_operand.hbm [shape: bf16[128,128], index: 1, kind: input, shape index: {}]
  %s2 = inlined_call_operand.hbm [shape: f32[3,384], index: 2, kind: output, shape index: {}]
  %s3 = sld [smem:[#allocation0]]
  $region26: #{tpu_custom_call.1} parent=0
    _
  %s5 = ssub.s32 1, %s3
  %s6 = scalar_select 0, %s5, %s3
  $region1: #{tpu_custom_call.1} parent=0
    #allocation2 [shape = 'u8[6144]{0}', space=vmem, size = 0x1800, scoped, tag = 'input window, operand 0, single buffered']
    #allocation3 [shape = 's32[1]{0}', space=sflag, size = 0x4, scoped, tag = 'scoped memory for tpu_custom_call.1']
    #allocation4 [shape = 's32[1]{0}', space=sflag, size = 0x4, scoped, tag = 'scoped memory for tpu_custom_call.1']
    #allocation5 [shape = 'u8[32768]{0}', space=vmem, size = 0x8000, scoped, tag = 'input window, operand 1, single buffered']
    #allocation6 [shape = 's32[1]{0}', space=sflag, size = 0x4, scoped, tag = 'scoped memory for tpu_custom_call.1']
    #allocation7 [shape = 'u8[6144]{0}', space=vmem, size = 0x1800, scoped, tag = 'output window, operand 0, single buffered']
    %7 = vsyncpa [#allocation3], 0
    %8 = vsyncpa [#allocation6], 0
    %9 = vsyncpa [#allocation4], 0
    // Predicated region
    $region2: #{tpu_custom_call.1} parent=1 // pred_check
      _
    $region3: #{tpu_custom_call.1} parent=1 // pred_check_branch
      %11 = sbr.rel (0) target = $region5
    $region4: #{tpu_custom_call.1} parent=1 // pred_region
      %13 = vsyncadd [#allocation3], 0
      %s15 = sshll.u32 %s0, 4
      %s16 = int_to_ptr.hbm [resolvable:$true] %s15
      %s17 = sshll.u32 [#allocation2], 4
      %s18 = int_to_ptr.vmem [resolvable:$true] %s17
      %20 = dma.hbm_to_vmem [thread:$0]  %s16, 192, %s18, [#allocation3]
    $region5: #{tpu_custom_call.1} parent=1 // pred_fallthru
      _
    // Predicated region
    $region6: #{tpu_custom_call.1} parent=1 // pred_check
      _
    $region7: #{tpu_custom_call.1} parent=1 // pred_check_branch
      %22 = sbr.rel (0) target = $region9
    $region8: #{tpu_custom_call.1} parent=1 // pred_region
      %24 = vsyncadd [#allocation6], 0
      %s25 = sshll.u32 %s1, 4
      %s26 = int_to_ptr.hbm [resolvable:$true] %s25
      %s27 = sshll.u32 [#allocation5], 4
      %s28 = int_to_ptr.vmem [resolvable:$true] %s27
      %33 = dma.hbm_to_vmem [thread:$0]  %s26, 1024, %s28, [#allocation6], 64, 64, 4
    $region9: #{tpu_custom_call.1} parent=1 // pred_fallthru
      _
    // Predicated region
    $region10: #{tpu_custom_call.1} parent=1 // pred_check
      _
    $region11: #{tpu_custom_call.1} parent=1 // pred_check_branch
      %35 = sbr.rel (0) target = $region13
    $region12: #{tpu_custom_call.1} parent=1 // pred_region
      %37 = dma.done [#allocation3], 192
    $region13: #{tpu_custom_call.1} parent=1 // pred_fallthru
      _
    // Predicated region
    $region14: #{tpu_custom_call.1} parent=1 // pred_check
      _
    $region15: #{tpu_custom_call.1} parent=1 // pred_check_branch
      %39 = sbr.rel (0) target = $region17
    $region16: #{tpu_custom_call.1} parent=1 // pred_region
      %41 = dma.done [#allocation6], 1024
    $region17: #{tpu_custom_call.1} parent=1 // pred_fallthru
      _
    %v43 = vld [vmem:[#allocation2] sm:$0xff]
    %v44 = vld [vmem:[#allocation2 + $0x8] sm:$0xf]
    %v45 = vld [vmem:[#allocation5] sm:$0xf]
    %v46 = vld [vmem:[#allocation5 + $0x4] sm:$0xf]
    %v47 = vld [vmem:[#allocation5 + $0x8] sm:$0xf]
    %v48 = vld [vmem:[#allocation5 + $0xc] sm:$0xf]
    %v49 = vld [vmem:[#allocation5 + $0x10] sm:$0xf]
    %v50 = vld [vmem:[#allocation5 + $0x14] sm:$0xf]
    %v51 = vld [vmem:[#allocation5 + $0x18] sm:$0xf]
    %v52 = vld [vmem:[#allocation5 + $0x1c] sm:$0xf]
    %v53 = vld [vmem:[#allocation5 + $0x20] sm:$0xf]
    %v54 = vld [vmem:[#allocation5 + $0x24] sm:$0xf]
    %v55 = vld [vmem:[#allocation5 + $0x28] sm:$0xf]
    %v56 = vld [vmem:[#allocation5 + $0x2c] sm:$0xf]
    %v57 = vunpack.c.l.bf16 %v53
    %v58 = vunpack.c.l.bf16 %v54
    %v59 = vunpack.c.l.bf16 %v55
    %v60 = vunpack.c.l.bf16 %v56
    %v61 = vld [vmem:[#allocation5 + $0x30] sm:$0xf]
    %v62 = vld [vmem:[#allocation5 + $0x34] sm:$0xf]
    %v63 = vunpack.c.l.bf16 %v61
    %v64 = vunpack.c.l.bf16 %v62
    %v65 = vld [vmem:[#allocation5 + $0x38] sm:$0x3]
    %v66 = vunpack.c.l.bf16 %v65
    %v75 = vunpack.c.l.b16 %v45
    %v76 = vunpack.c.l.b16 %v46
    %v77 = vunpack.c.l.b16 %v47
    %v78 = vunpack.c.l.b16 %v48
    %v79 = vunpack.c.l.b16 %v49
    %v80 = vunpack.c.l.b16 %v50
    %v81 = vunpack.c.l.b16 %v51
    %v82 = vunpack.c.l.b16 %v52
    %v83 = vpack.c.b16 %v76, %v75
    %v84 = vpack.c.b16 %v78, %v77
    %v85 = vpack.c.b16 %v80, %v79
    %v86 = vpack.c.b16 %v82, %v81
    %v89 = vunpack.c.l.b16 %v43
    %v90 = vunpack.c.h.b16 %v43
    %v91 = vunpack.c.l.b16 %v44
    %v92 = vpack.c.b16 %v89, %v89
    %v93 = vpack.c.b16 %v90, %v90
    %v94 = vpack.c.b16 %v91, %v91
    %vm95 = vcmask 64512
    %v97 = vsel %vm95, %v83, 0
    %v100 = vsel %vm95, %v84, 0
    %v103 = vsel %vm95, %v85, 0
    %v106 = vsel %vm95, %v86, 0
    %vm108 = vcmask 1043456
    %v110 = vsel %vm108, %v92, 0
    %v113 = vsel %vm108, %v93, 0
    %v116 = vsel %vm108, %v94, 0
    %118 = vmatpush.bf16.msra.mxu0 0
    %119 = vmatpush.bf16.msra.mxu0 0
    %120 = vmatpush.bf16.msra.mxu0 0
    %121 = vmatpush.bf16.msra.mxu0 0
    %122 = vmatpush.bf16.msra.mxu0 0
    %123 = vmatpush.bf16.msra.mxu0 0
    %124 = vmatpush.bf16.msra.mxu0 0
    %125 = vmatpush.bf16.msra.mxu0 %v110
    %126 = vmatmul.bf16.gmra.mxu0 %v97
    %v127 = vpop.f32.mrf.mxu0
    %v128 = vadd.f32 0.0, %v127
    %v129 = vpop.f32.mrf.mxu0
    %v130 = vadd.f32 0.0, %v129
    %131 = vmatmul.bf16.gmra.mxu0 %v100
    %v132 = vpop.f32.mrf.mxu0
    %v133 = vadd.f32 0.0, %v132
    %v134 = vpop.f32.mrf.mxu0
    %v135 = vadd.f32 0.0, %v134
    %136 = vmatmul.bf16.gmra.mxu0 %v103
    %v137 = vpop.f32.mrf.mxu0
    %v138 = vadd.f32 0.0, %v137
    %v139 = vpop.f32.mrf.mxu0
    %v140 = vadd.f32 0.0, %v139
    %141 = vmatmul.bf16.gmra.mxu0 %v106
    %v142 = vpop.f32.mrf.mxu0
    %v143 = vadd.f32 0.0, %v142
    %v144 = vpop.f32.mrf.mxu0
    %v145 = vadd.f32 0.0, %v144
    %146 = vdwg.mxu0
    %147 = vmatpush.bf16.msra.mxu0 0
    %148 = vmatpush.bf16.msra.mxu0 0
    %149 = vmatpush.bf16.msra.mxu0 0
    %150 = vmatpush.bf16.msra.mxu0 0
    %151 = vmatpush.bf16.msra.mxu0 0
    %152 = vmatpush.bf16.msra.mxu0 0
    %153 = vmatpush.bf16.msra.mxu0 0
    %154 = vmatpush.bf16.msra.mxu0 %v113
    %155 = vmatmul.bf16.gmra.mxu0 %v97
    %v156 = vpop.f32.mrf.mxu0
    %v157 = vadd.f32 0.0, %v156
    %v158 = vpop.f32.mrf.mxu0
    %v159 = vadd.f32 0.0, %v158
    %160 = vmatmul.bf16.gmra.mxu0 %v100
    %v161 = vpop.f32.mrf.mxu0
    %v162 = vadd.f32 0.0, %v161
    %v163 = vpop.f32.mrf.mxu0
    %v164 = vadd.f32 0.0, %v163
    %165 = vmatmul.bf16.gmra.mxu0 %v103
    %v166 = vpop.f32.mrf.mxu0
    %v167 = vadd.f32 0.0, %v166
    %v168 = vpop.f32.mrf.mxu0
    %v169 = vadd.f32 0.0, %v168
    %170 = vmatmul.bf16.gmra.mxu0 %v106
    %v171 = vpop.f32.mrf.mxu0
    %v172 = vadd.f32 0.0, %v171
    %v173 = vpop.f32.mrf.mxu0
    %v174 = vadd.f32 0.0, %v173
    %175 = vdwg.mxu0
    %176 = vmatpush.bf16.msra.mxu0 0
    %177 = vmatpush.bf16.msra.mxu0 0
    %178 = vmatpush.bf16.msra.mxu0 0
    %179 = vmatpush.bf16.msra.mxu0 0
    %180 = vmatpush.bf16.msra.mxu0 0
    %181 = vmatpush.bf16.msra.mxu0 0
    %182 = vmatpush.bf16.msra.mxu0 0
    %183 = vmatpush.bf16.msra.mxu0 %v116
    %184 = vmatmul.bf16.gmra.mxu0 %v97
    %v185 = vpop.f32.mrf.mxu0
    %v186 = vadd.f32 0.0, %v185
    %v187 = vpop.f32.mrf.mxu0
    %v188 = vadd.f32 0.0, %v187
    %189 = vmatmul.bf16.gmra.mxu0 %v100
    %v190 = vpop.f32.mrf.mxu0
    %v191 = vadd.f32 0.0, %v190
    %v192 = vpop.f32.mrf.mxu0
    %v193 = vadd.f32 0.0, %v192
    %194 = vmatmul.bf16.gmra.mxu0 %v103
    %v195 = vpop.f32.mrf.mxu0
    %v196 = vadd.f32 0.0, %v195
    %v197 = vpop.f32.mrf.mxu0
    %v198 = vadd.f32 0.0, %v197
    %199 = vmatmul.bf16.gmra.mxu0 %v106
    %v200 = vpop.f32.mrf.mxu0
    %v201 = vadd.f32 0.0, %v200
    %v202 = vpop.f32.mrf.mxu0
    %v203 = vadd.f32 0.0, %v202
    %204 = vdwg.mxu0
    %v205 = vmax.f32 %v128, 0.0
    %v206 = vmax.f32 %v157, 0.0
    %v207 = vmax.f32 %v186, 0.0
    %v208 = vmax.f32 %v130, 0.0
    %v209 = vmax.f32 %v159, 0.0
    %v210 = vmax.f32 %v188, 0.0
    %v211 = vmax.f32 %v133, 0.0
    %v212 = vmax.f32 %v162, 0.0
    %v213 = vmax.f32 %v191, 0.0
    %v214 = vmax.f32 %v135, 0.0
    %v215 = vmax.f32 %v164, 0.0
    %v216 = vmax.f32 %v193, 0.0
    %v217 = vmax.f32 %v138, 0.0
    %v218 = vmax.f32 %v167, 0.0
    %v219 = vmax.f32 %v196, 0.0
    %v220 = vmax.f32 %v140, 0.0
    %v221 = vmax.f32 %v169, 0.0
    %v222 = vmax.f32 %v198, 0.0
    %v223 = vmax.f32 %v143, 0.0
    %v224 = vmax.f32 %v172, 0.0
    %v225 = vmax.f32 %v201, 0.0
    %v226 = vmax.f32 %v145, 0.0
    %v227 = vmax.f32 %v174, 0.0
    %v228 = vmax.f32 %v203, 0.0
    %v229 = vpack.c.bf16 %v208, %v205
    %v230 = vpack.c.bf16 %v209, %v206
    %v231 = vpack.c.bf16 %v210, %v207
    %v232 = vpack.c.bf16 %v214, %v211
    %v233 = vpack.c.bf16 %v215, %v212
    %v234 = vpack.c.bf16 %v216, %v213
    %v235 = vpack.c.bf16 %v220, %v217
    %v236 = vpack.c.bf16 %v221, %v218
    %v237 = vpack.c.bf16 %v222, %v219
    %v238 = vpack.c.bf16 %v226, %v223
    %v239 = vpack.c.bf16 %v227, %v224
    %v240 = vpack.c.bf16 %v228, %v225
    %242 = vset.pattern.permute.xlu0 120
    %243 = vperm.xlu0 %242, %v57
    %v244 = vpop.permute.xlu0 %243
    %247 = vset.pattern.permute.xlu0 120
    %248 = vperm.xlu0 %247, %v58
    %v249 = vpop.permute.xlu0 %248
    %252 = vset.pattern.permute.xlu0 120
    %253 = vperm.xlu0 %252, %v59
    %v254 = vpop.permute.xlu0 %253
    %257 = vset.pattern.permute.xlu0 120
    %258 = vperm.xlu0 %257, %v60
    %v259 = vpop.permute.xlu0 %258
    %v265 = vunpack.c.l.b16 %v53
    %v266 = vunpack.c.l.b16 %v54
    %v267 = vunpack.c.l.b16 %v55
    %v268 = vunpack.c.l.b16 %v56
    %v269 = vpack.c.b16 %v266, %v265
    %v270 = vpack.c.b16 %v268, %v267
    %vm271 = vcmask 523264
    %v273 = vsel %vm271, %v269, 0
    %v276 = vsel %vm271, %v270, 0
    %278 = vmatpush.bf16.msra.mxu0 0
    %279 = vmatpush.bf16.msra.mxu0 0
    %280 = vmatpush.bf16.msra.mxu0 0
    %281 = vmatpush.bf16.msra.mxu0 0
    %282 = vmatpush.bf16.msra.mxu0 %v238
    %283 = vmatpush.bf16.msra.mxu0 %v235
    %284 = vmatpush.bf16.msra.mxu0 %v232
    %285 = vmatpush.bf16.msra.mxu0 %v229
    %286 = vmatmul.bf16.gmra.mxu0 %v273
    %v287 = vpop.f32.mrf.mxu0
    %v288 = vadd.f32 %v244, %v287
    %v289 = vpop.f32.mrf.mxu0
    %v290 = vadd.f32 %v249, %v289
    %291 = vmatmul.bf16.gmra.mxu0 %v276
    %v292 = vpop.f32.mrf.mxu0
    %v293 = vadd.f32 %v254, %v292
    %v294 = vpop.f32.mrf.mxu0
    %v295 = vadd.f32 %v259, %v294
    %296 = vdwg.mxu0
    %297 = vmatpush.bf16.msra.mxu0 0
    %298 = vmatpush.bf16.msra.mxu0 0
    %299 = vmatpush.bf16.msra.mxu0 0
    %300 = vmatpush.bf16.msra.mxu0 0
    %301 = vmatpush.bf16.msra.mxu0 %v239
    %302 = vmatpush.bf16.msra.mxu0 %v236
    %303 = vmatpush.bf16.msra.mxu0 %v233
    %304 = vmatpush.bf16.msra.mxu0 %v230
    %305 = vmatmul.bf16.gmra.mxu0 %v273
    %v306 = vpop.f32.mrf.mxu0
    %v307 = vadd.f32 %v244, %v306
    %v308 = vpop.f32.mrf.mxu0
    %v309 = vadd.f32 %v249, %v308
    %310 = vmatmul.bf16.gmra.mxu0 %v276
    %v311 = vpop.f32.mrf.mxu0
    %v312 = vadd.f32 %v254, %v311
    %v313 = vpop.f32.mrf.mxu0
    %v314 = vadd.f32 %v259, %v313
    %315 = vdwg.mxu0
    %316 = vmatpush.bf16.msra.mxu0 0
    %317 = vmatpush.bf16.msra.mxu0 0
    %318 = vmatpush.bf16.msra.mxu0 0
    %319 = vmatpush.bf16.msra.mxu0 0
    %320 = vmatpush.bf16.msra.mxu0 %v240
    %321 = vmatpush.bf16.msra.mxu0 %v237
    %322 = vmatpush.bf16.msra.mxu0 %v234
    %323 = vmatpush.bf16.msra.mxu0 %v231
    %324 = vmatmul.bf16.gmra.mxu0 %v273
    %v325 = vpop.f32.mrf.mxu0
    %v326 = vadd.f32 %v244, %v325
    %v327 = vpop.f32.mrf.mxu0
    %v328 = vadd.f32 %v249, %v327
    %329 = vmatmul.bf16.gmra.mxu0 %v276
    %v330 = vpop.f32.mrf.mxu0
    %v331 = vadd.f32 %v254, %v330
    %v332 = vpop.f32.mrf.mxu0
    %v333 = vadd.f32 %v259, %v332
    %334 = vdwg.mxu0
    %v335 = vmax.f32 %v288, 0.0
    %v336 = vmax.f32 %v307, 0.0
    %v337 = vmax.f32 %v326, 0.0
    %v338 = vmax.f32 %v290, 0.0
    %v339 = vmax.f32 %v309, 0.0
    %v340 = vmax.f32 %v328, 0.0
    %v341 = vmax.f32 %v293, 0.0
    %v342 = vmax.f32 %v312, 0.0
    %v343 = vmax.f32 %v331, 0.0
    %v344 = vmax.f32 %v295, 0.0
    %v345 = vmax.f32 %v314, 0.0
    %v346 = vmax.f32 %v333, 0.0
    %v347 = vpack.c.bf16 %v338, %v335
    %v348 = vpack.c.bf16 %v339, %v336
    %v349 = vpack.c.bf16 %v340, %v337
    %v350 = vpack.c.bf16 %v344, %v341
    %v351 = vpack.c.bf16 %v345, %v342
    %v352 = vpack.c.bf16 %v346, %v343
    %354 = vset.pattern.permute.xlu0 120
    %355 = vperm.xlu0 %354, %v63
    %v356 = vpop.permute.xlu0 %355
    %359 = vset.pattern.permute.xlu0 120
    %360 = vperm.xlu0 %359, %v64
    %v361 = vpop.permute.xlu0 %360
    %v365 = vunpack.c.l.b16 %v61
    %v366 = vunpack.c.l.b16 %v62
    %v367 = vpack.c.b16 %v366, %v365
    %vm368 = vcmask 261120
    %v370 = vsel %vm368, %v367, 0
    %372 = vmatpush.bf16.msra.mxu0 0
    %373 = vmatpush.bf16.msra.mxu0 0
    %374 = vmatpush.bf16.msra.mxu0 0
    %375 = vmatpush.bf16.msra.mxu0 0
    %376 = vmatpush.bf16.msra.mxu0 0
    %377 = vmatpush.bf16.msra.mxu0 0
    %378 = vmatpush.bf16.msra.mxu0 %v350
    %379 = vmatpush.bf16.msra.mxu0 %v347
    %380 = vmatmul.bf16.gmra.mxu0 %v370
    %v381 = vpop.f32.mrf.mxu0
    %v382 = vadd.f32 %v356, %v381
    %v383 = vpop.f32.mrf.mxu0
    %v384 = vadd.f32 %v361, %v383
    %385 = vdwg.mxu0
    %386 = vmatpush.bf16.msra.mxu0 0
    %387 = vmatpush.bf16.msra.mxu0 0
    %388 = vmatpush.bf16.msra.mxu0 0
    %389 = vmatpush.bf16.msra.mxu0 0
    %390 = vmatpush.bf16.msra.mxu0 0
    %391 = vmatpush.bf16.msra.mxu0 0
    %392 = vmatpush.bf16.msra.mxu0 %v351
    %393 = vmatpush.bf16.msra.mxu0 %v348
    %394 = vmatmul.bf16.gmra.mxu0 %v370
    %v395 = vpop.f32.mrf.mxu0
    %v396 = vadd.f32 %v356, %v395
    %v397 = vpop.f32.mrf.mxu0
    %v398 = vadd.f32 %v361, %v397
    %399 = vdwg.mxu0
    %400 = vmatpush.bf16.msra.mxu0 0
    %401 = vmatpush.bf16.msra.mxu0 0
    %402 = vmatpush.bf16.msra.mxu0 0
    %403 = vmatpush.bf16.msra.mxu0 0
    %404 = vmatpush.bf16.msra.mxu0 0
    %405 = vmatpush.bf16.msra.mxu0 0
    %406 = vmatpush.bf16.msra.mxu0 %v352
    %407 = vmatpush.bf16.msra.mxu0 %v349
    %408 = vmatmul.bf16.gmra.mxu0 %v370
    %v409 = vpop.f32.mrf.mxu0
    %v410 = vadd.f32 %v356, %v409
    %v411 = vpop.f32.mrf.mxu0
    %v412 = vadd.f32 %v361, %v411
    %413 = vdwg.mxu0
    %v414 = vmax.f32 %v382, 0.0
    %v415 = vmax.f32 %v396, 0.0
    %v416 = vmax.f32 %v410, 0.0
    %v417 = vmax.f32 %v384, 0.0
    %v418 = vmax.f32 %v398, 0.0
    %v419 = vmax.f32 %v412, 0.0
    %v420 = vpack.c.bf16 %v417, %v414
    %v421 = vpack.c.bf16 %v418, %v415
    %v422 = vpack.c.bf16 %v419, %v416
    %424 = vset.pattern.permute.xlu0 120
    %425 = vperm.xlu0 %424, %v66
    %v426 = vpop.permute.xlu0 %425
    %vm428 = vcmask 130048
    %v430 = vsel %vm428, %v65, 0
    %432 = vmatpush.bf16.msra.mxu0 0
    %433 = vmatpush.bf16.msra.mxu0 0
    %434 = vmatpush.bf16.msra.mxu0 0
    %435 = vmatpush.bf16.msra.mxu0 0
    %436 = vmatpush.bf16.msra.mxu0 0
    %437 = vmatpush.bf16.msra.mxu0 0
    %438 = vmatpush.bf16.msra.mxu0 0
    %439 = vmatpush.bf16.msra.mxu0 %v420
    %440 = vmatmul.bf16.gmra.mxu0 %v430
    %v441 = vpop.f32.mrf.mxu0
    %v442 = vadd.f32 %v426, %v441
    %v443 = vpop.f32.mrf.mxu0
    %444 = vdwg.mxu0
    %445 = vmatpush.bf16.msra.mxu0 0
    %446 = vmatpush.bf16.msra.mxu0 0
    %447 = vmatpush.bf16.msra.mxu0 0
    %448 = vmatpush.bf16.msra.mxu0 0
    %449 = vmatpush.bf16.msra.mxu0 0
    %450 = vmatpush.bf16.msra.mxu0 0
    %451 = vmatpush.bf16.msra.mxu0 0
    %452 = vmatpush.bf16.msra.mxu0 %v421
    %453 = vmatmul.bf16.gmra.mxu0 %v430
    %v454 = vpop.f32.mrf.mxu0
    %v455 = vadd.f32 %v426, %v454
    %v456 = vpop.f32.mrf.mxu0
    %457 = vdwg.mxu0
    %458 = vmatpush.bf16.msra.mxu0 0
    %459 = vmatpush.bf16.msra.mxu0 0
    %460 = vmatpush.bf16.msra.mxu0 0
    %461 = vmatpush.bf16.msra.mxu0 0
    %462 = vmatpush.bf16.msra.mxu0 0
    %463 = vmatpush.bf16.msra.mxu0 0
    %464 = vmatpush.bf16.msra.mxu0 0
    %465 = vmatpush.bf16.msra.mxu0 %v422
    %466 = vmatmul.bf16.gmra.mxu0 %v430
    %v467 = vpop.f32.mrf.mxu0
    %v468 = vadd.f32 %v426, %v467
    %v469 = vpop.f32.mrf.mxu0
    %470 = vdwg.mxu0
    %v473 = vrot.slane %v455, 4
    %v474 = vsel %vm108, %v442, %v473
    %476 = vst [vmem:[#allocation7] sm:$0x77] %v474
    %477 = vst [vmem:[#allocation7 + $0x8] sm:$0x7] %v468
    // Predicated region
    $region18: #{tpu_custom_call.1} parent=1 // pred_check
      _
    $region19: #{tpu_custom_call.1} parent=1 // pred_check_branch
      %479 = sbr.rel (0) target = $region21
    $region20: #{tpu_custom_call.1} parent=1 // pred_region
      %481 = vsyncadd [#allocation4], 0
      %s483 = sshll.u32 [#allocation7], 4
      %s484 = int_to_ptr.vmem [resolvable:$true] %s483
      %s485 = sshll.u32 %s2, 4
      %s486 = int_to_ptr.hbm [resolvable:$true] %s485
      %488 = dma.vmem_to_hbm [thread:$0]  %s484, 192, %s486, [#allocation4]
    $region21: #{tpu_custom_call.1} parent=1 // pred_fallthru
      _
    // Predicated region
    $region22: #{tpu_custom_call.1} parent=1 // pred_check
      _
    $region23: #{tpu_custom_call.1} parent=1 // pred_check_branch
      %490 = sbr.rel (0) target = $region25
    $region24: #{tpu_custom_call.1} parent=1 // pred_region
      %492 = dma.done [#allocation4], 192
    $region25: #{tpu_custom_call.1} parent=1 // pred_fallthru
      _
    %493 = vsyncpa [#allocation3], 1
    %494 = vsyncpa [#allocation6], 1
    %495 = vsyncpa [#allocation4], 1

</llo_original>
